<compile_context>
chip_gen: v5e
topology: v5e:2x2
jax: 0.10.0
libtpu: 0.0.40
codegen_flags: <defaults>
</compile_context>

<pallas_src>
import functools

import jax
import jax.numpy as jnp
from jax import lax
from jax.experimental import pallas as pl
from jax.experimental.pallas import tpu as pltpu


# ---------------------------------------------------------------------------
# helpers
# ---------------------------------------------------------------------------

def _round_up(x, m):
    return ((x + m - 1) // m) * m


def _pad_to(a, shape):
    pads = [(0, s - d) for d, s in zip(a.shape, shape)]
    return jnp.pad(a, pads)


def _largest_tile(total, pref, quantum):
    """Largest multiple of `quantum` <= pref that divides `total` (fallback: total)."""
    pref = min(pref, total)
    t = (pref // quantum) * quantum
    while t >= quantum:
        if total % t == 0:
            return t
        t -= quantum
    return total


# ---------------------------------------------------------------------------
# kernel 1: serial RNN recurrence over a chunk of timesteps
# ---------------------------------------------------------------------------

def _rnn_recurrence_kernel(x_ref, whh_ref, b_ref, h0_ref,
                           hall_ref, hT_ref, h_carry,
                           *, t_real, mask_tail, unroll):
    """One grid step processes a chunk of `Tt` timesteps.

    x_ref    : (Tt, B_p, H_p) f32   gathered input projections W_ih[token_t]
    whh_ref  : (H_p, H_p)     bf16  hidden->hidden weight (transposed, resident)
    b_ref    : (1, H_p)       f32   pre-summed bias b_ih + b_hh (resident)
    h0_ref   : (B_p, H_p)     f32   initial hidden state (resident)
    hall_ref : (Tt, B_p, H_p) bf16  all hidden states for this chunk (head input)
    hT_ref   : (B_p, H_p)     f32   final hidden state (written on last chunk)
    h_carry  : VMEM scratch (B_p, H_p) f32 -- carries h across grid steps
    """
    chunk = pl.program_id(0)
    n_chunks = pl.num_programs(0)
    t_steps = x_ref.shape[0]
    b_p, h_p = h0_ref.shape

    @pl.when(chunk == 0)
    def _():
        h_carry[...] = h0_ref[...]

    # Hoisted out of the per-step loop: resident bf16 weight + bias broadcast.
    w_hh = whh_ref[...]
    bias = jnp.broadcast_to(b_ref[...], (b_p, h_p))
    t_base = chunk * t_steps

    def step(i, h_prev):
        # bf16 MXU operands on the latency-critical serial path; f32 accumulate.
        pre = (x_ref[i]
               + jnp.dot(h_prev.astype(w_hh.dtype), w_hh,
                         preferred_element_type=jnp.float32)
               + bias)
        h_new = jnp.tanh(pre)                          # f32 tanh (EUP)
        if mask_tail:
            # Padded tail timesteps keep the previous state (exact h at T-1).
            h_new = jnp.where(t_base + i < t_real, h_new, h_prev)
        hall_ref[i] = h_new.astype(hall_ref.dtype)     # bf16 store for the head
        return h_new                                   # carried in vregs

    h_last = lax.fori_loop(0, t_steps, step, h_carry[...], unroll=unroll)
    h_carry[...] = h_last

    @pl.when(chunk == n_chunks - 1)
    def _():
        hT_ref[...] = h_last


# ---------------------------------------------------------------------------
# kernel 2: dense head  out = H @ W_d + b_d  (lane-dense, grid-parallel)
# ---------------------------------------------------------------------------

def _dense_head_kernel(h_ref, wd_ref, bd_ref, o_ref):
    acc = jnp.dot(h_ref[...], wd_ref[...], preferred_element_type=jnp.float32)
    o_ref[...] = (acc + bd_ref[...]).astype(o_ref.dtype)


# ---------------------------------------------------------------------------
# wrapper
# ---------------------------------------------------------------------------

def rnn_model_forward(inputs, params, state=None, *,
                      time_chunk=32, unroll=8,
                      head_row_tile=512, head_col_tile=512):
    """inputs: (B, T) int32 token ids. Returns (output (T*B, V), state (1, B, H))."""
    W_ih, W_hh, b_ih, b_hh, W_d, b_d = params   # weights stored transposed vs torch
    B, T = inputs.shape
    V, H = W_ih.shape
    f32 = jnp.float32
    bf16 = jnp.bfloat16

    # Pad batch to a multiple of 16 (dense sublanes for f32 / bf16-packed tiles),
    # hidden/vocab to multiples of 128 (dense lanes / full MXU tiles).
    B_p = _round_up(B, 16)
    H_p = _round_up(H, 128)
    V_p = _round_up(V, 128)

    # Balanced time chunking: never collapses to 1 step per grid iteration and
    # wastes at most n_chunks-1 padded steps (masked inside the kernel).
    n_chunks = pl.cdiv(T, time_chunk)
    Tt = pl.cdiv(T, n_chunks)
    T_pad = n_chunks * Tt
    unroll_n = max(1, min(unroll, Tt))

    # --- input projection as a gather: x_t is one-hot, so x_t @ W_ih == W_ih[token].
    W_ih_h = _pad_to(W_ih.astype(f32), (V, H_p))          # pad hidden dim only
    x_proj = W_ih_h[inputs.T]                             # (T, B, H_p), time-major
    x_proj = _pad_to(x_proj, (T_pad, B_p, H_p))           # zero-pad batch + tail time

    W_hh_p = _pad_to(W_hh.astype(f32), (H_p, H_p)).astype(bf16)  # resident, half VMEM
    b_sum = _pad_to((b_ih + b_hh).astype(f32).reshape(1, H), (1, H_p))

    if state is None:
        h0 = jnp.zeros((B_p, H_p), f32)
    else:
        h0 = _pad_to(state.reshape(B, H).astype(f32), (B_p, H_p))

    rec_kernel = functools.partial(
        _rnn_recurrence_kernel,
        t_real=T, mask_tail=(T_pad != T), unroll=unroll_n)

    grid_spec = pltpu.PrefetchScalarGridSpec(
        num_scalar_prefetch=0,
        grid=(n_chunks,),
        in_specs=[
            pl.BlockSpec((Tt, B_p, H_p), lambda t: (t, 0, 0)),   # streamed x chunk
            pl.BlockSpec((H_p, H_p),     lambda t: (0, 0)),      # W_hh bf16 (resident)
            pl.BlockSpec((1, H_p),       lambda t: (0, 0)),      # bias (resident)
            pl.BlockSpec((B_p, H_p),     lambda t: (0, 0)),      # h0   (resident)
        ],
        out_specs=(
            pl.BlockSpec((Tt, B_p, H_p), lambda t: (t, 0, 0)),   # streamed h chunk
            pl.BlockSpec((B_p, H_p),     lambda t: (0, 0)),      # final h (resident)
        ),
        scratch_shapes=[pltpu.VMEM((B_p, H_p), f32)],
    )

    h_all, hT = pl.pallas_call(
        rec_kernel,
        grid_spec=grid_spec,
        out_shape=(jax.ShapeDtypeStruct((T_pad, B_p, H_p), bf16),
                   jax.ShapeDtypeStruct((B_p, H_p), f32)),
        compiler_params=pltpu.CompilerParams(
            dimension_semantics=("arbitrary",),        # serial recurrence over time
            vmem_limit_bytes=32 * 1024 * 1024),
    )(x_proj, W_hh_p, b_sum, h0)

    # --- dense head, hoisted out of the recurrence ------------------------------
    # Strip batch (and tail-time) padding BEFORE the GEMM; pad rows only up to
    # the 128-multiple row tile so MXU passes are full and stores lane-dense.
    M_real = T * B
    tm = min(head_row_tile, _round_up(M_real, 128))
    tm = max(128, (tm // 128) * 128)
    M_pad = _round_up(M_real, tm)
    tn = _largest_tile(V_p, head_col_tile, 128)

    h_flat = h_all[:T, :B, :].reshape(M_real, H_p)        # bf16 activations, real rows
    h_flat = _pad_to(h_flat, (M_pad, H_p))

    W_d_p = _pad_to(W_d.astype(f32), (H_p, V_p)).astype(bf16)
    b_d_p = _pad_to(b_d.astype(f32).reshape(1, V), (1, V_p))

    head_spec = pltpu.PrefetchScalarGridSpec(
        num_scalar_prefetch=0,
        # Vocab axis OUTER: each W_d block is fetched from HBM exactly once;
        # only the (smaller) activation operand is re-streamed per vocab tile.
        grid=(V_p // tn, M_pad // tm),
        in_specs=[
            pl.BlockSpec((tm, H_p), lambda j, i: (i, 0)),
            pl.BlockSpec((H_p, tn), lambda j, i: (0, j)),
            pl.BlockSpec((1, tn),   lambda j, i: (0, j)),
        ],
        out_specs=pl.BlockSpec((tm, tn), lambda j, i: (i, j)),
    )

    out_p = pl.pallas_call(
        _dense_head_kernel,
        grid_spec=head_spec,
        out_shape=jax.ShapeDtypeStruct((M_pad, V_p), f32),
        compiler_params=pltpu.CompilerParams(
            dimension_semantics=("parallel", "parallel"),   # megacore-shardable
            vmem_limit_bytes=32 * 1024 * 1024),
    )(h_flat, W_d_p, b_d_p)

    # Strip padding; match PyTorch layouts.
    out = out_p[:M_real, :V]                              # (T*B, V)
    state_out = hT[:B, :H].reshape(1, B, H)
    return out, state_out


# ---------------------------------------------------------------------------
# params + pure-JAX reference
# ---------------------------------------------------------------------------

def init_params(key, vocab_size, hidden_size):
    """PyTorch-default-style init (uniform(-1/sqrt(H), 1/sqrt(H))), weights transposed."""
    k = jax.random.split(key, 6)
    bound = 1.0 / (hidden_size ** 0.5)
    u = lambda kk, shape: jax.random.uniform(kk, shape, jnp.float32, -bound, bound)
    W_ih = u(k[0], (vocab_size, hidden_size))    # transposed vs torch (H, V)
    W_hh = u(k[1], (hidden_size, hidden_size))   # transposed vs torch (H, H)
    b_ih = u(k[2], (hidden_size,))
    b_hh = u(k[3], (hidden_size,))
    W_d  = u(k[4], (hidden_size, vocab_size))    # transposed vs torch (V, H)
    b_d  = u(k[5], (vocab_size,))
    return (W_ih, W_hh, b_ih, b_hh, W_d, b_d)


def reference_forward(inputs, params, state=None):
    """Pure-JAX (f32) reference of the PyTorch forward, for correctness check."""
    W_ih, W_hh, b_ih, b_hh, W_d, b_d = params
    B, T = inputs.shape
    V, H = W_ih.shape
    X = jax.nn.one_hot(inputs.T, V, dtype=jnp.float32)           # (T, B, V)
    h = jnp.zeros((B, H), jnp.float32) if state is None else state.reshape(B, H)

    def step(h, x_t):
        h_new = jnp.tanh(x_t @ W_ih + h @ W_hh + b_ih + b_hh)
        return h_new, h_new

    hT, Y = lax.scan(step, h, X)                                  # Y: (T, B, H)
    out = Y.reshape(-1, H) @ W_d + b_d
    return out, hT.reshape(1, B, H)


if __name__ == "__main__":
    # Small shapes consistent with the module (vocab one-hot input, hidden RNN).
    batch, seq, vocab_size, hidden = 2, 8, 16, 32

    key = jax.random.PRNGKey(0)
    kp, ki, ks, k2 = jax.random.split(key, 4)
    params = init_params(kp, vocab_size, hidden)
    inputs = jax.random.randint(ki, (batch, seq), 0, vocab_size, dtype=jnp.int32)

    out, state = rnn_model_forward(inputs, params, state=None)
    jax.block_until_ready((out, state))

    ref_out, ref_state = reference_forward(inputs, params, state=None)
    assert out.shape == (seq * batch, vocab_size)
    assert state.shape == (1, batch, hidden)
    # Recurrence matmul and head use bf16 MXU operands (f32 accumulate) -- this
    # is an intentional deviation from the f32 PyTorch path, hence tolerances.
    assert jnp.allclose(state, ref_state, atol=5e-2, rtol=5e-2), \
        float(jnp.max(jnp.abs(state - ref_state)))
    assert jnp.allclose(out, ref_out, atol=5e-2, rtol=5e-2), \
        float(jnp.max(jnp.abs(out - ref_out)))

    # Second check: awkward sequence length (tail-time padding + masking),
    # provided initial state, multi-chunk carry, batch padding.
    batch2, seq2 = 3, 10
    inputs2 = jax.random.randint(k2, (batch2, seq2), 0, vocab_size, dtype=jnp.int32)
    state0 = 0.5 * jax.random.normal(ks, (1, batch2, hidden), jnp.float32)
    out2, state2 = rnn_model_forward(inputs2, params, state=state0, time_chunk=4)
    jax.block_until_ready((out2, state2))
    ref_out2, ref_state2 = reference_forward(inputs2, params, state=state0)
    assert out2.shape == (seq2 * batch2, vocab_size)
    assert state2.shape == (1, batch2, hidden)
    assert jnp.allclose(state2, ref_state2, atol=5e-2, rtol=5e-2), \
        float(jnp.max(jnp.abs(state2 - ref_state2)))
    assert jnp.allclose(out2, ref_out2, atol=5e-2, rtol=5e-2), \
        float(jnp.max(jnp.abs(out2 - ref_out2)))

    print("KERNEL_OK")
</pallas_src>

<mosaic_0001>
module attributes {stable_mosaic.version = 11 : i64} {
  func.func @_rnn_recurrence_kernel(%arg0: i32, %arg1: memref<8x16x128xf32, #tpu.memory_space<vmem>>, %arg2: memref<128x128xbf16, #tpu.memory_space<vmem>>, %arg3: memref<1x128xf32, #tpu.memory_space<vmem>>, %arg4: memref<16x128xf32, #tpu.memory_space<vmem>>, %arg5: memref<8x16x128xbf16, #tpu.memory_space<vmem>>, %arg6: memref<16x128xf32, #tpu.memory_space<vmem>>, %arg7: memref<16x128xf32, #tpu.memory_space<vmem>>) attributes {dimension_semantics = [#tpu.dimension_semantics<arbitrary>], iteration_bounds = array<i64: 1>, scalar_prefetch = 0 : i64, scratch_operands = 1 : i64, tpu.core_type = #tpu.core_type<tc>, window_params = [{transform_indices = @transform_0, window_bounds = array<i64: 8, 16, 128>}, {pipeline_mode = #tpu.pipeline_mode<synchronous>, transform_indices = @transform_1, window_bounds = array<i64: 128, 128>}, {pipeline_mode = #tpu.pipeline_mode<synchronous>, transform_indices = @transform_2, window_bounds = array<i64: 1, 128>}, {pipeline_mode = #tpu.pipeline_mode<synchronous>, transform_indices = @transform_3, window_bounds = array<i64: 16, 128>}, {transform_indices = @transform_4, window_bounds = array<i64: 8, 16, 128>}, {pipeline_mode = #tpu.pipeline_mode<synchronous>, transform_indices = @transform_5, window_bounds = array<i64: 16, 128>}]} {
    %c0_i32 = arith.constant 0 : i32
    %0 = arith.cmpi eq, %arg0, %c0_i32 : i32
    %1 = arith.extui %0 : i1 to i32
    %c0_i32_0 = arith.constant 0 : i32
    %2 = arith.cmpi ne, %1, %c0_i32_0 : i32
    scf.if %2 {
      %c0_50 = arith.constant 0 : index
      %c0_51 = arith.constant 0 : index
      %116 = vector.load %arg4[%c0_50, %c0_51] : memref<16x128xf32, #tpu.memory_space<vmem>>, vector<16x128xf32>
      %c0_52 = arith.constant 0 : index
      %c0_53 = arith.constant 0 : index
      %117 = vector.load %arg7[%c0_52, %c0_53] : memref<16x128xf32, #tpu.memory_space<vmem>>, vector<16x128xf32>
      tpu.vector_store %arg7[%c0_52, %c0_53], %116 {strides = array<i32>} : memref<16x128xf32, #tpu.memory_space<vmem>>, vector<16x128xf32>,
    } else {
    }
    %c0 = arith.constant 0 : index
    %c0_1 = arith.constant 0 : index
    %3 = vector.load %arg2[%c0, %c0_1] : memref<128x128xbf16, #tpu.memory_space<vmem>>, vector<128x128xbf16>
    %c0_2 = arith.constant 0 : index
    %c0_3 = arith.constant 0 : index
    %4 = vector.load %arg3[%c0_2, %c0_3] : memref<1x128xf32, #tpu.memory_space<vmem>>, vector<1x128xf32>
    %5 = vector.shape_cast %4 : vector<1x128xf32> to vector<1x128xf32>
    %6 = vector.broadcast %5 : vector<1x128xf32> to vector<16x128xf32>
    %c0_4 = arith.constant 0 : index
    %c0_5 = arith.constant 0 : index
    %7 = vector.load %arg7[%c0_4, %c0_5] : memref<16x128xf32, #tpu.memory_space<vmem>>, vector<16x128xf32>
    %c0_i32_6 = arith.constant 0 : i32
    %8 = arith.index_cast %c0_i32_6 : i32 to index
    %c0_7 = arith.constant 0 : index
    %c0_8 = arith.constant 0 : index
    %9 = vector.load %arg1[%8, %c0_7, %c0_8] : memref<8x16x128xf32, #tpu.memory_space<vmem>>, vector<1x16x128xf32>
    %10 = vector.shape_cast %9 : vector<1x16x128xf32> to vector<16x128xf32>
    %11 = arith.truncf %7 : vector<16x128xf32> to vector<16x128xbf16>
    %cst = arith.constant dense<0.000000e+00> : vector<16x128xf32>
    %12 = tpu.matmul %11, %3, %cst {dimension_numbers = #tpu.dot_dimension_numbers<[1], [0], [0], [1], [0, 0, 1, 1], [], []>} : vector<16x128xbf16>, vector<128x128xbf16>, vector<16x128xf32> -> vector<16x128xf32>
    %13 = arith.addf %10, %12 : vector<16x128xf32>
    %14 = arith.addf %13, %6 : vector<16x128xf32>
    %15 = math.tanh %14 : vector<16x128xf32>
    %16 = arith.truncf %15 : vector<16x128xf32> to vector<16x128xbf16>
    %17 = arith.index_cast %c0_i32_6 : i32 to index
    %c0_9 = arith.constant 0 : index
    %c0_10 = arith.constant 0 : index
    %18 = vector.load %arg5[%17, %c0_9, %c0_10] : memref<8x16x128xbf16, #tpu.memory_space<vmem>>, vector<1x16x128xbf16>
    %19 = vector.shape_cast %18 : vector<1x16x128xbf16> to vector<16x128xbf16>
    %20 = vector.shape_cast %16 : vector<16x128xbf16> to vector<1x16x128xbf16>
    tpu.vector_store %arg5[%17, %c0_9, %c0_10], %20 {strides = array<i32>} : memref<8x16x128xbf16, #tpu.memory_space<vmem>>, vector<1x16x128xbf16>,
    %c1_i32 = arith.constant 1 : i32
    %21 = arith.index_cast %c1_i32 : i32 to index
    %c0_11 = arith.constant 0 : index
    %c0_12 = arith.constant 0 : index
    %22 = vector.load %arg1[%21, %c0_11, %c0_12] : memref<8x16x128xf32, #tpu.memory_space<vmem>>, vector<1x16x128xf32>
    %23 = vector.shape_cast %22 : vector<1x16x128xf32> to vector<16x128xf32>
    %24 = arith.truncf %15 : vector<16x128xf32> to vector<16x128xbf16>
    %cst_13 = arith.constant dense<0.000000e+00> : vector<16x128xf32>
    %25 = tpu.matmul %24, %3, %cst_13 {dimension_numbers = #tpu.dot_dimension_numbers<[1], [0], [0], [1], [0, 0, 1, 1], [], []>} : vector<16x128xbf16>, vector<128x128xbf16>, vector<16x128xf32> -> vector<16x128xf32>
    %26 = arith.addf %23, %25 : vector<16x128xf32>
    %27 = arith.addf %26, %6 : vector<16x128xf32>
    %28 = math.tanh %27 : vector<16x128xf32>
    %29 = arith.truncf %28 : vector<16x128xf32> to vector<16x128xbf16>
    %30 = arith.index_cast %c1_i32 : i32 to index
    %c0_14 = arith.constant 0 : index
    %c0_15 = arith.constant 0 : index
    %31 = vector.load %arg5[%30, %c0_14, %c0_15] : memref<8x16x128xbf16, #tpu.memory_space<vmem>>, vector<1x16x128xbf16>
    %32 = vector.shape_cast %31 : vector<1x16x128xbf16> to vector<16x128xbf16>
    %33 = vector.shape_cast %29 : vector<16x128xbf16> to vector<1x16x128xbf16>
    tpu.vector_store %arg5[%30, %c0_14, %c0_15], %33 {strides = array<i32>} : memref<8x16x128xbf16, #tpu.memory_space<vmem>>, vector<1x16x128xbf16>,
    %c2_i32 = arith.constant 2 : i32
    %34 = arith.index_cast %c2_i32 : i32 to index
    %c0_16 = arith.constant 0 : index
    %c0_17 = arith.constant 0 : index
    %35 = vector.load %arg1[%34, %c0_16, %c0_17] : memref<8x16x128xf32, #tpu.memory_space<vmem>>, vector<1x16x128xf32>
    %36 = vector.shape_cast %35 : vector<1x16x128xf32> to vector<16x128xf32>
    %37 = arith.truncf %28 : vector<16x128xf32> to vector<16x128xbf16>
    %cst_18 = arith.constant dense<0.000000e+00> : vector<16x128xf32>
    %38 = tpu.matmul %37, %3, %cst_18 {dimension_numbers = #tpu.dot_dimension_numbers<[1], [0], [0], [1], [0, 0, 1, 1], [], []>} : vector<16x128xbf16>, vector<128x128xbf16>, vector<16x128xf32> -> vector<16x128xf32>
    %39 = arith.addf %36, %38 : vector<16x128xf32>
    %40 = arith.addf %39, %6 : vector<16x128xf32>
    %41 = math.tanh %40 : vector<16x128xf32>
    %42 = arith.truncf %41 : vector<16x128xf32> to vector<16x128xbf16>
    %43 = arith.index_cast %c2_i32 : i32 to index
    %c0_19 = arith.constant 0 : index
    %c0_20 = arith.constant 0 : index
    %44 = vector.load %arg5[%43, %c0_19, %c0_20] : memref<8x16x128xbf16, #tpu.memory_space<vmem>>, vector<1x16x128xbf16>
    %45 = vector.shape_cast %44 : vector<1x16x128xbf16> to vector<16x128xbf16>
    %46 = vector.shape_cast %42 : vector<16x128xbf16> to vector<1x16x128xbf16>
    tpu.vector_store %arg5[%43, %c0_19, %c0_20], %46 {strides = array<i32>} : memref<8x16x128xbf16, #tpu.memory_space<vmem>>, vector<1x16x128xbf16>,
    %c3_i32 = arith.constant 3 : i32
    %47 = arith.index_cast %c3_i32 : i32 to index
    %c0_21 = arith.constant 0 : index
    %c0_22 = arith.constant 0 : index
    %48 = vector.load %arg1[%47, %c0_21, %c0_22] : memref<8x16x128xf32, #tpu.memory_space<vmem>>, vector<1x16x128xf32>
    %49 = vector.shape_cast %48 : vector<1x16x128xf32> to vector<16x128xf32>
    %50 = arith.truncf %41 : vector<16x128xf32> to vector<16x128xbf16>
    %cst_23 = arith.constant dense<0.000000e+00> : vector<16x128xf32>
    %51 = tpu.matmul %50, %3, %cst_23 {dimension_numbers = #tpu.dot_dimension_numbers<[1], [0], [0], [1], [0, 0, 1, 1], [], []>} : vector<16x128xbf16>, vector<128x128xbf16>, vector<16x128xf32> -> vector<16x128xf32>
    %52 = arith.addf %49, %51 : vector<16x128xf32>
    %53 = arith.addf %52, %6 : vector<16x128xf32>
    %54 = math.tanh %53 : vector<16x128xf32>
    %55 = arith.truncf %54 : vector<16x128xf32> to vector<16x128xbf16>
    %56 = arith.index_cast %c3_i32 : i32 to index
    %c0_24 = arith.constant 0 : index
    %c0_25 = arith.constant 0 : index
    %57 = vector.load %arg5[%56, %c0_24, %c0_25] : memref<8x16x128xbf16, #tpu.memory_space<vmem>>, vector<1x16x128xbf16>
    %58 = vector.shape_cast %57 : vector<1x16x128xbf16> to vector<16x128xbf16>
    %59 = vector.shape_cast %55 : vector<16x128xbf16> to vector<1x16x128xbf16>
    tpu.vector_store %arg5[%56, %c0_24, %c0_25], %59 {strides = array<i32>} : memref<8x16x128xbf16, #tpu.memory_space<vmem>>, vector<1x16x128xbf16>,
    %c4_i32 = arith.constant 4 : i32
    %60 = arith.index_cast %c4_i32 : i32 to index
    %c0_26 = arith.constant 0 : index
    %c0_27 = arith.constant 0 : index
    %61 = vector.load %arg1[%60, %c0_26, %c0_27] : memref<8x16x128xf32, #tpu.memory_space<vmem>>, vector<1x16x128xf32>
    %62 = vector.shape_cast %61 : vector<1x16x128xf32> to vector<16x128xf32>
    %63 = arith.truncf %54 : vector<16x128xf32> to vector<16x128xbf16>
    %cst_28 = arith.constant dense<0.000000e+00> : vector<16x128xf32>
    %64 = tpu.matmul %63, %3, %cst_28 {dimension_numbers = #tpu.dot_dimension_numbers<[1], [0], [0], [1], [0, 0, 1, 1], [], []>} : vector<16x128xbf16>, vector<128x128xbf16>, vector<16x128xf32> -> vector<16x128xf32>
    %65 = arith.addf %62, %64 : vector<16x128xf32>
    %66 = arith.addf %65, %6 : vector<16x128xf32>
    %67 = math.tanh %66 : vector<16x128xf32>
    %68 = arith.truncf %67 : vector<16x128xf32> to vector<16x128xbf16>
    %69 = arith.index_cast %c4_i32 : i32 to index
    %c0_29 = arith.constant 0 : index
    %c0_30 = arith.constant 0 : index
    %70 = vector.load %arg5[%69, %c0_29, %c0_30] : memref<8x16x128xbf16, #tpu.memory_space<vmem>>, vector<1x16x128xbf16>
    %71 = vector.shape_cast %70 : vector<1x16x128xbf16> to vector<16x128xbf16>
    %72 = vector.shape_cast %68 : vector<16x128xbf16> to vector<1x16x128xbf16>
    tpu.vector_store %arg5[%69, %c0_29, %c0_30], %72 {strides = array<i32>} : memref<8x16x128xbf16, #tpu.memory_space<vmem>>, vector<1x16x128xbf16>,
    %c5_i32 = arith.constant 5 : i32
    %73 = arith.index_cast %c5_i32 : i32 to index
    %c0_31 = arith.constant 0 : index
    %c0_32 = arith.constant 0 : index
    %74 = vector.load %arg1[%73, %c0_31, %c0_32] : memref<8x16x128xf32, #tpu.memory_space<vmem>>, vector<1x16x128xf32>
    %75 = vector.shape_cast %74 : vector<1x16x128xf32> to vector<16x128xf32>
    %76 = arith.truncf %67 : vector<16x128xf32> to vector<16x128xbf16>
    %cst_33 = arith.constant dense<0.000000e+00> : vector<16x128xf32>
    %77 = tpu.matmul %76, %3, %cst_33 {dimension_numbers = #tpu.dot_dimension_numbers<[1], [0], [0], [1], [0, 0, 1, 1], [], []>} : vector<16x128xbf16>, vector<128x128xbf16>, vector<16x128xf32> -> vector<16x128xf32>
    %78 = arith.addf %75, %77 : vector<16x128xf32>
    %79 = arith.addf %78, %6 : vector<16x128xf32>
    %80 = math.tanh %79 : vector<16x128xf32>
    %81 = arith.truncf %80 : vector<16x128xf32> to vector<16x128xbf16>
    %82 = arith.index_cast %c5_i32 : i32 to index
    %c0_34 = arith.constant 0 : index
    %c0_35 = arith.constant 0 : index
    %83 = vector.load %arg5[%82, %c0_34, %c0_35] : memref<8x16x128xbf16, #tpu.memory_space<vmem>>, vector<1x16x128xbf16>
    %84 = vector.shape_cast %83 : vector<1x16x128xbf16> to vector<16x128xbf16>
    %85 = vector.shape_cast %81 : vector<16x128xbf16> to vector<1x16x128xbf16>
    tpu.vector_store %arg5[%82, %c0_34, %c0_35], %85 {strides = array<i32>} : memref<8x16x128xbf16, #tpu.memory_space<vmem>>, vector<1x16x128xbf16>,
    %c6_i32 = arith.constant 6 : i32
    %86 = arith.index_cast %c6_i32 : i32 to index
    %c0_36 = arith.constant 0 : index
    %c0_37 = arith.constant 0 : index
    %87 = vector.load %arg1[%86, %c0_36, %c0_37] : memref<8x16x128xf32, #tpu.memory_space<vmem>>, vector<1x16x128xf32>
    %88 = vector.shape_cast %87 : vector<1x16x128xf32> to vector<16x128xf32>
    %89 = arith.truncf %80 : vector<16x128xf32> to vector<16x128xbf16>
    %cst_38 = arith.constant dense<0.000000e+00> : vector<16x128xf32>
    %90 = tpu.matmul %89, %3, %cst_38 {dimension_numbers = #tpu.dot_dimension_numbers<[1], [0], [0], [1], [0, 0, 1, 1], [], []>} : vector<16x128xbf16>, vector<128x128xbf16>, vector<16x128xf32> -> vector<16x128xf32>
    %91 = arith.addf %88, %90 : vector<16x128xf32>
    %92 = arith.addf %91, %6 : vector<16x128xf32>
    %93 = math.tanh %92 : vector<16x128xf32>
    %94 = arith.truncf %93 : vector<16x128xf32> to vector<16x128xbf16>
    %95 = arith.index_cast %c6_i32 : i32 to index
    %c0_39 = arith.constant 0 : index
    %c0_40 = arith.constant 0 : index
    %96 = vector.load %arg5[%95, %c0_39, %c0_40] : memref<8x16x128xbf16, #tpu.memory_space<vmem>>, vector<1x16x128xbf16>
    %97 = vector.shape_cast %96 : vector<1x16x128xbf16> to vector<16x128xbf16>
    %98 = vector.shape_cast %94 : vector<16x128xbf16> to vector<1x16x128xbf16>
    tpu.vector_store %arg5[%95, %c0_39, %c0_40], %98 {strides = array<i32>} : memref<8x16x128xbf16, #tpu.memory_space<vmem>>, vector<1x16x128xbf16>,
    %c7_i32 = arith.constant 7 : i32
    %99 = arith.index_cast %c7_i32 : i32 to index
    %c0_41 = arith.constant 0 : index
    %c0_42 = arith.constant 0 : index
    %100 = vector.load %arg1[%99, %c0_41, %c0_42] : memref<8x16x128xf32, #tpu.memory_space<vmem>>, vector<1x16x128xf32>
    %101 = vector.shape_cast %100 : vector<1x16x128xf32> to vector<16x128xf32>
    %102 = arith.truncf %93 : vector<16x128xf32> to vector<16x128xbf16>
    %cst_43 = arith.constant dense<0.000000e+00> : vector<16x128xf32>
    %103 = tpu.matmul %102, %3, %cst_43 {dimension_numbers = #tpu.dot_dimension_numbers<[1], [0], [0], [1], [0, 0, 1, 1], [], []>} : vector<16x128xbf16>, vector<128x128xbf16>, vector<16x128xf32> -> vector<16x128xf32>
    %104 = arith.addf %101, %103 : vector<16x128xf32>
    %105 = arith.addf %104, %6 : vector<16x128xf32>
    %106 = math.tanh %105 : vector<16x128xf32>
    %107 = arith.truncf %106 : vector<16x128xf32> to vector<16x128xbf16>
    %108 = arith.index_cast %c7_i32 : i32 to index
    %c0_44 = arith.constant 0 : index
    %c0_45 = arith.constant 0 : index
    %109 = vector.load %arg5[%108, %c0_44, %c0_45] : memref<8x16x128xbf16, #tpu.memory_space<vmem>>, vector<1x16x128xbf16>
    %110 = vector.shape_cast %109 : vector<1x16x128xbf16> to vector<16x128xbf16>
    %111 = vector.shape_cast %107 : vector<16x128xbf16> to vector<1x16x128xbf16>
    tpu.vector_store %arg5[%108, %c0_44, %c0_45], %111 {strides = array<i32>} : memref<8x16x128xbf16, #tpu.memory_space<vmem>>, vector<1x16x128xbf16>,
    %c8_i32 = arith.constant 8 : i32
    %c0_46 = arith.constant 0 : index
    %c0_47 = arith.constant 0 : index
    %112 = vector.load %arg7[%c0_46, %c0_47] : memref<16x128xf32, #tpu.memory_space<vmem>>, vector<16x128xf32>
    tpu.vector_store %arg7[%c0_46, %c0_47], %106 {strides = array<i32>} : memref<16x128xf32, #tpu.memory_space<vmem>>, vector<16x128xf32>,
    %c0_i32_48 = arith.constant 0 : i32
    %113 = arith.cmpi eq, %arg0, %c0_i32_48 : i32
    %114 = arith.extui %113 : i1 to i32
    %c0_i32_49 = arith.constant 0 : i32
    %115 = arith.cmpi ne, %114, %c0_i32_49 : i32
    scf.if %115 {
      %c0_50 = arith.constant 0 : index
      %c0_51 = arith.constant 0 : index
      %116 = vector.load %arg6[%c0_50, %c0_51] : memref<16x128xf32, #tpu.memory_space<vmem>>, vector<16x128xf32>
      tpu.vector_store %arg6[%c0_50, %c0_51], %106 {strides = array<i32>} : memref<16x128xf32, #tpu.memory_space<vmem>>, vector<16x128xf32>,
    } else {
    }
    return
  }
  func.func @transform_0(%arg0: i32) -> (i32, i32, i32) {
    %c0_i32 = arith.constant 0 : i32
    %c0_i32_0 = arith.constant 0 : i32
    %c0_i32_1 = arith.constant 0 : i32
    return %arg0, %c0_i32, %c0_i32_0 : i32, i32, i32
  }
  func.func @transform_1(%arg0: i32) -> (i32, i32) {
    %c0_i32 = arith.constant 0 : i32
    %c0_i32_0 = arith.constant 0 : i32
    %c0_i32_1 = arith.constant 0 : i32
    return %c0_i32, %c0_i32_0 : i32, i32
  }
  func.func @transform_2(%arg0: i32) -> (i32, i32) {
    %c0_i32 = arith.constant 0 : i32
    %c0_i32_0 = arith.constant 0 : i32
    %c0_i32_1 = arith.constant 0 : i32
    return %c0_i32, %c0_i32_0 : i32, i32
  }
  func.func @transform_3(%arg0: i32) -> (i32, i32) {
    %c0_i32 = arith.constant 0 : i32
    %c0_i32_0 = arith.constant 0 : i32
    %c0_i32_1 = arith.constant 0 : i32
    return %c0_i32, %c0_i32_0 : i32, i32
  }
  func.func @transform_4(%arg0: i32) -> (i32, i32, i32) {
    %c0_i32 = arith.constant 0 : i32
    %c0_i32_0 = arith.constant 0 : i32
    %c0_i32_1 = arith.constant 0 : i32
    return %arg0, %c0_i32, %c0_i32_0 : i32, i32, i32
  }
  func.func @transform_5(%arg0: i32) -> (i32, i32) {
    %c0_i32 = arith.constant 0 : i32
    %c0_i32_0 = arith.constant 0 : i32
    %c0_i32_1 = arith.constant 0 : i32
    return %c0_i32, %c0_i32_0 : i32, i32
  }
}

</mosaic_0001>

<llo_original>
// kernel: tpu_custom_call.1
$region0: #{tpu_custom_call.1}
  #allocation0 [shape = 'u32[]', space=smem, size = 0x4, offset = 0x4, fixed_abs, tag = 'smem constant byte address 0x4 - core index']
  #allocation1 [shape = 'u32[72,128]{1,0:T(1,128)}', space=vmem, size = 0x9000, scoped, tag = 'internal scratch']
  #allocation2 [shape = 'f32[16,128]{1,0:T(8,128)}', space=vmem, size = 0x2000, scoped, tag = 'scratch operand']
  %s0 = inlined_call_operand.hbm [shape: f32[8,16,128], index: 0, kind: input, shape index: {}]
  %s1 = inlined_call_operand.hbm [shape: bf16[128,128], index: 1, kind: input, shape index: {}]
  %s2 = inlined_call_operand.vmem [shape: f32[1,128], index: 2, kind: input, shape index: {}]
  %s3 = inlined_call_operand.hbm [shape: f32[16,128], index: 3, kind: input, shape index: {}]
  %s4 = inlined_call_operand.hbm [shape: bf16[8,16,128], index: 4, kind: output, shape index: {0}]
  %s5 = inlined_call_operand.hbm [shape: f32[16,128], index: 5, kind: output, shape index: {1}]
  %6 = xla_tuple %s4, %s5
  %s7 = sld [smem:[#allocation0]]
  $region54: #{tpu_custom_call.1} parent=0
    _
  %s9 = ssub.s32 1, %s7
  %s10 = scalar_select 0, %s9, %s7
  $region1: #{tpu_custom_call.1} parent=0
    #allocation3 [shape = 'u8[65536]{0}', space=vmem, size = 0x10000, scoped, tag = 'input window, operand 0, single buffered']
    #allocation4 [shape = 's32[1]{0}', space=sflag, size = 0x4, scoped, tag = 'scoped memory for tpu_custom_call.1']
    #allocation5 [shape = 's32[1]{0}', space=sflag, size = 0x4, scoped, tag = 'scoped memory for tpu_custom_call.1']
    #allocation6 [shape = 'u8[32768]{0}', space=vmem, size = 0x8000, scoped, tag = 'input window, operand 1, single buffered']
    #allocation7 [shape = 's32[1]{0}', space=sflag, size = 0x4, scoped, tag = 'scoped memory for tpu_custom_call.1']
    #allocation8 [shape = 'u8[8192]{0}', space=vmem, size = 0x2000, scoped, tag = 'input window, operand 3, single buffered']
    #allocation9 [shape = 'u8[32768]{0}', space=vmem, size = 0x8000, scoped, tag = 'output window, operand 0, single buffered']
    #allocation10 [shape = 'u8[8192]{0}', space=vmem, size = 0x2000, scoped, tag = 'output window, operand 1, single buffered']
    #allocation11 [shape = 's32[1]{0}', space=sflag, size = 0x4, scoped, tag = 'scoped memory for tpu_custom_call.1']
    %11 = vsyncpa [#allocation4], 0
    %12 = vsyncpa [#allocation7], 0
    %13 = vsyncpa [#allocation5], 0
    %14 = vsyncpa [#allocation11], 0
    // Predicated region
    $region2: #{tpu_custom_call.1} parent=1 // pred_check
      _
    $region3: #{tpu_custom_call.1} parent=1 // pred_check_branch
      %16 = sbr.rel (0) target = $region5
    $region4: #{tpu_custom_call.1} parent=1 // pred_region
      %18 = vsyncadd [#allocation4], 0
      %s19 = sshll.u32 %s0, 4
      %s20 = int_to_ptr.hbm [resolvable:$true] %s19
      %s21 = sshll.u32 [#allocation3], 4
      %s22 = int_to_ptr.vmem [resolvable:$true] %s21
      %27 = dma.hbm_to_vmem [thread:$0]  %s20, 2048, %s22, [#allocation4], 128, 128, 8
    $region5: #{tpu_custom_call.1} parent=1 // pred_fallthru
      _
    // Predicated region
    $region6: #{tpu_custom_call.1} parent=1 // pred_check
      _
    $region7: #{tpu_custom_call.1} parent=1 // pred_check_branch
      %29 = sbr.rel (0) target = $region9
    $region8: #{tpu_custom_call.1} parent=1 // pred_region
      %31 = vsyncadd [#allocation7], 0
      %s32 = sshll.u32 %s1, 4
      %s33 = int_to_ptr.hbm [resolvable:$true] %s32
      %s34 = sshll.u32 [#allocation6], 4
      %s35 = int_to_ptr.vmem [resolvable:$true] %s34
      %40 = dma.hbm_to_vmem [thread:$0]  %s33, 1024, %s35, [#allocation7], 64, 64, 4
    $region9: #{tpu_custom_call.1} parent=1 // pred_fallthru
      _
    // Predicated region
    $region10: #{tpu_custom_call.1} parent=1 // pred_check
      _
    $region11: #{tpu_custom_call.1} parent=1 // pred_check_branch
      %42 = sbr.rel (0) target = $region13
    $region12: #{tpu_custom_call.1} parent=1 // pred_region
      _
    $region13: #{tpu_custom_call.1} parent=1 // pred_fallthru
      _
    // Predicated region
    $region14: #{tpu_custom_call.1} parent=1 // pred_check
      _
    $region15: #{tpu_custom_call.1} parent=1 // pred_check_branch
      %44 = sbr.rel (0) target = $region17
    $region16: #{tpu_custom_call.1} parent=1 // pred_region
      %46 = vsyncadd [#allocation7], 0
      %s47 = sshll.u32 %s3, 4
      %s48 = int_to_ptr.hbm [resolvable:$true] %s47
      %s49 = sshll.u32 [#allocation8], 4
      %s50 = int_to_ptr.vmem [resolvable:$true] %s49
      %55 = dma.hbm_to_vmem [thread:$0]  %s48, 256, %s50, [#allocation7], 128, 128, 8
    $region17: #{tpu_custom_call.1} parent=1 // pred_fallthru
      _
    // Predicated region
    $region18: #{tpu_custom_call.1} parent=1 // pred_check
      _
    $region19: #{tpu_custom_call.1} parent=1 // pred_check_branch
      %57 = sbr.rel (0) target = $region21
    $region20: #{tpu_custom_call.1} parent=1 // pred_region
      %59 = dma.done [#allocation4], 2048
    $region21: #{tpu_custom_call.1} parent=1 // pred_fallthru
      _
    // Predicated region
    $region22: #{tpu_custom_call.1} parent=1 // pred_check
      _
    $region23: #{tpu_custom_call.1} parent=1 // pred_check_branch
      %61 = sbr.rel (0) target = $region25
    $region24: #{tpu_custom_call.1} parent=1 // pred_region
      %63 = dma.done [#allocation7], 1024
    $region25: #{tpu_custom_call.1} parent=1 // pred_fallthru
      _
    // Predicated region
    $region26: #{tpu_custom_call.1} parent=1 // pred_check
      _
    $region27: #{tpu_custom_call.1} parent=1 // pred_check_branch
      %65 = sbr.rel (0) target = $region29
    $region28: #{tpu_custom_call.1} parent=1 // pred_region
      %67 = dma.done [#allocation7], 256
    $region29: #{tpu_custom_call.1} parent=1 // pred_fallthru
      _
    %p68 = scmp.eq.s32.totalorder 0, 0
    // Predicated region
    $region30: #{tpu_custom_call.1} parent=1 // pred_check
      %p69 = pneg %p68
    $region31: #{tpu_custom_call.1} parent=1 // pred_check_branch
      %71 = sbr.rel (%p69) target = $region33
    $region32: #{tpu_custom_call.1} parent=1 // pred_region
      %v72 = vld [vmem:[#allocation8] sm:$0xff]
      %v73 = vld [vmem:[#allocation8 + $0x8] sm:$0xff]
      %74 = vst [vmem:[#allocation2] sm:$0xff] %v72
      %75 = vst [vmem:[#allocation2 + $0x8] sm:$0xff] %v73
    $region33: #{tpu_custom_call.1} parent=1 // pred_fallthru
      _
    %v76 = vld [vmem:[#allocation6] sm:$0xf]
    %v77 = vld [vmem:[#allocation6 + $0x4] sm:$0xf]
    %v78 = vld [vmem:[#allocation6 + $0x8] sm:$0xf]
    %v79 = vld [vmem:[#allocation6 + $0xc] sm:$0xf]
    %v80 = vld [vmem:[#allocation6 + $0x10] sm:$0xf]
    %v81 = vld [vmem:[#allocation6 + $0x14] sm:$0xf]
    %v82 = vld [vmem:[#allocation6 + $0x18] sm:$0xf]
    %v83 = vld [vmem:[#allocation6 + $0x1c] sm:$0xf]
    %v84 = vld [vmem:[#allocation6 + $0x20] sm:$0xf]
    %v85 = vld [vmem:[#allocation6 + $0x24] sm:$0xf]
    %v86 = vld [vmem:[#allocation6 + $0x28] sm:$0xf]
    %v87 = vld [vmem:[#allocation6 + $0x2c] sm:$0xf]
    %v88 = vld [vmem:[#allocation6 + $0x30] sm:$0xf]
    %v89 = vld [vmem:[#allocation6 + $0x34] sm:$0xf]
    %v90 = vld [vmem:[#allocation6 + $0x38] sm:$0xf]
    %v91 = vld [vmem:[#allocation6 + $0x3c] sm:$0xf]
    %v92 = vld [vmem:[%s2] sm:$0x1]
    %v94 = vperm.slane %v92, 0
    %v96 = vld [vmem:[#allocation2] sm:$0xff]
    %v97 = vld [vmem:[#allocation2 + $0x8] sm:$0xff]
    %v98 = vld [vmem:[#allocation3] sm:$0xff]
    %v99 = vld [vmem:[#allocation3 + $0x8] sm:$0xff]
    %v100 = vpack.c.bf16 %v97, %v96
    %v117 = vunpack.c.l.b16 %v76
    %v118 = vunpack.c.l.b16 %v77
    %v119 = vunpack.c.l.b16 %v78
    %v120 = vunpack.c.l.b16 %v79
    %v121 = vunpack.c.l.b16 %v80
    %v122 = vunpack.c.l.b16 %v81
    %v123 = vunpack.c.l.b16 %v82
    %v124 = vunpack.c.l.b16 %v83
    %v125 = vunpack.c.l.b16 %v84
    %v126 = vunpack.c.l.b16 %v85
    %v127 = vunpack.c.l.b16 %v86
    %v128 = vunpack.c.l.b16 %v87
    %v129 = vunpack.c.l.b16 %v88
    %v130 = vunpack.c.l.b16 %v89
    %v131 = vunpack.c.l.b16 %v90
    %v132 = vunpack.c.l.b16 %v91
    %v133 = vpack.c.b16 %v118, %v117
    %v134 = vpack.c.b16 %v120, %v119
    %v135 = vpack.c.b16 %v122, %v121
    %v136 = vpack.c.b16 %v124, %v123
    %v137 = vpack.c.b16 %v126, %v125
    %v138 = vpack.c.b16 %v128, %v127
    %v139 = vpack.c.b16 %v130, %v129
    %v140 = vpack.c.b16 %v132, %v131
    %149 = vmatpush.bf16.msra.mxu0 %v140
    %150 = vmatpush.bf16.msra.mxu0 %v139
    %151 = vmatpush.bf16.msra.mxu0 %v138
    %152 = vmatpush.bf16.msra.mxu0 %v137
    %153 = vmatpush.bf16.msra.mxu0 %v136
    %154 = vmatpush.bf16.msra.mxu0 %v135
    %155 = vmatpush.bf16.msra.mxu0 %v134
    %156 = vmatpush.bf16.msra.mxu0 %v133
    %157 = vmatmul.bf16.gmra.mxu0 %v100
    %v158 = vpop.f32.mrf.mxu0
    %v159 = vadd.f32 0.0, %v158
    %v160 = vpop.f32.mrf.mxu0
    %v161 = vadd.f32 0.0, %v160
    %162 = vdwg.mxu0
    %v163 = vadd.f32 %v98, %v159
    %v164 = vadd.f32 %v99, %v161
    %v165 = vadd.f32 %v163, %v94
    %v166 = vadd.f32 %v164, %v94
    %v167 = vtanh.pop %v165
    %v168 = vtanh.pop %v166
    %v169 = vpack.c.bf16 %v167, %v167
    %v170 = vpack.c.bf16 %v168, %v168
    %171 = vst [vmem:[#allocation9] sm:$0xf] %v169
    %172 = vst [vmem:[#allocation9 + $0x4] sm:$0xf] %v170
    %s173 = scalar_lea.vmem [#allocation3], 16
    %v174 = vld [vmem:[%s173] sm:$0xff]
    %v175 = vld [vmem:[%s173 + $0x8] sm:$0xff]
    %v178 = vunpack.c.l.b16 %v169
    %v179 = vunpack.c.l.b16 %v170
    %v180 = vpack.c.b16 %v179, %v178
    %182 = vmatpush.bf16.msra.mxu0 %v140
    %183 = vmatpush.bf16.msra.mxu0 %v139
    %184 = vmatpush.bf16.msra.mxu0 %v138
    %185 = vmatpush.bf16.msra.mxu0 %v137
    %186 = vmatpush.bf16.msra.mxu0 %v136
    %187 = vmatpush.bf16.msra.mxu0 %v135
    %188 = vmatpush.bf16.msra.mxu0 %v134
    %189 = vmatpush.bf16.msra.mxu0 %v133
    %190 = vmatmul.bf16.gmra.mxu0 %v180
    %v191 = vpop.f32.mrf.mxu0
    %v192 = vadd.f32 0.0, %v191
    %v193 = vpop.f32.mrf.mxu0
    %v194 = vadd.f32 0.0, %v193
    %195 = vdwg.mxu0
    %v196 = vadd.f32 %v174, %v192
    %v197 = vadd.f32 %v175, %v194
    %v198 = vadd.f32 %v196, %v94
    %v199 = vadd.f32 %v197, %v94
    %v200 = vtanh.pop %v198
    %v201 = vtanh.pop %v199
    %v202 = vpack.c.bf16 %v200, %v200
    %v203 = vpack.c.bf16 %v201, %v201
    %s204 = scalar_lea.vmem [#allocation9], 8
    %205 = vst [vmem:[%s204] sm:$0xf] %v202
    %206 = vst [vmem:[%s204 + $0x4] sm:$0xf] %v203
    %s207 = scalar_lea.vmem [#allocation3], 32
    %v208 = vld [vmem:[%s207] sm:$0xff]
    %v209 = vld [vmem:[%s207 + $0x8] sm:$0xff]
    %v212 = vunpack.c.l.b16 %v202
    %v213 = vunpack.c.l.b16 %v203
    %v214 = vpack.c.b16 %v213, %v212
    %216 = vmatpush.bf16.msra.mxu0 %v140
    %217 = vmatpush.bf16.msra.mxu0 %v139
    %218 = vmatpush.bf16.msra.mxu0 %v138
    %219 = vmatpush.bf16.msra.mxu0 %v137
    %220 = vmatpush.bf16.msra.mxu0 %v136
    %221 = vmatpush.bf16.msra.mxu0 %v135
    %222 = vmatpush.bf16.msra.mxu0 %v134
    %223 = vmatpush.bf16.msra.mxu0 %v133
    %224 = vmatmul.bf16.gmra.mxu0 %v214
    %v225 = vpop.f32.mrf.mxu0
    %v226 = vadd.f32 0.0, %v225
    %v227 = vpop.f32.mrf.mxu0
    %v228 = vadd.f32 0.0, %v227
    %229 = vdwg.mxu0
    %v230 = vadd.f32 %v208, %v226
    %v231 = vadd.f32 %v209, %v228
    %v232 = vadd.f32 %v230, %v94
    %v233 = vadd.f32 %v231, %v94
    %v234 = vtanh.pop %v232
    %v235 = vtanh.pop %v233
    %v236 = vpack.c.bf16 %v234, %v234
    %v237 = vpack.c.bf16 %v235, %v235
    %s238 = scalar_lea.vmem [#allocation9], 16
    %239 = vst [vmem:[%s238] sm:$0xf] %v236
    %240 = vst [vmem:[%s238 + $0x4] sm:$0xf] %v237
    %s241 = scalar_lea.vmem [#allocation3], 48
    %v242 = vld [vmem:[%s241] sm:$0xff]
    %v243 = vld [vmem:[%s241 + $0x8] sm:$0xff]
    %v246 = vunpack.c.l.b16 %v236
    %v247 = vunpack.c.l.b16 %v237
    %v248 = vpack.c.b16 %v247, %v246
    %250 = vmatpush.bf16.msra.mxu0 %v140
    %251 = vmatpush.bf16.msra.mxu0 %v139
    %252 = vmatpush.bf16.msra.mxu0 %v138
    %253 = vmatpush.bf16.msra.mxu0 %v137
    %254 = vmatpush.bf16.msra.mxu0 %v136
    %255 = vmatpush.bf16.msra.mxu0 %v135
    %256 = vmatpush.bf16.msra.mxu0 %v134
    %257 = vmatpush.bf16.msra.mxu0 %v133
    %258 = vmatmul.bf16.gmra.mxu0 %v248
    %v259 = vpop.f32.mrf.mxu0
    %v260 = vadd.f32 0.0, %v259
    %v261 = vpop.f32.mrf.mxu0
    %v262 = vadd.f32 0.0, %v261
    %263 = vdwg.mxu0
    %v264 = vadd.f32 %v242, %v260
    %v265 = vadd.f32 %v243, %v262
    %v266 = vadd.f32 %v264, %v94
    %v267 = vadd.f32 %v265, %v94
    %v268 = vtanh.pop %v266
    %v269 = vtanh.pop %v267
    %v270 = vpack.c.bf16 %v268, %v268
    %v271 = vpack.c.bf16 %v269, %v269
    %s272 = scalar_lea.vmem [#allocation9], 24
    %273 = vst [vmem:[%s272] sm:$0xf] %v270
    %274 = vst [vmem:[%s272 + $0x4] sm:$0xf] %v271
    %s275 = scalar_lea.vmem [#allocation3], 64
    %v276 = vld [vmem:[%s275] sm:$0xff]
    %v277 = vld [vmem:[%s275 + $0x8] sm:$0xff]
    %v280 = vunpack.c.l.b16 %v270
    %v281 = vunpack.c.l.b16 %v271
    %v282 = vpack.c.b16 %v281, %v280
    %284 = vmatpush.bf16.msra.mxu0 %v140
    %285 = vmatpush.bf16.msra.mxu0 %v139
    %286 = vmatpush.bf16.msra.mxu0 %v138
    %287 = vmatpush.bf16.msra.mxu0 %v137
    %288 = vmatpush.bf16.msra.mxu0 %v136
    %289 = vmatpush.bf16.msra.mxu0 %v135
    %290 = vmatpush.bf16.msra.mxu0 %v134
    %291 = vmatpush.bf16.msra.mxu0 %v133
    %292 = vmatmul.bf16.gmra.mxu0 %v282
    %v293 = vpop.f32.mrf.mxu0
    %v294 = vadd.f32 0.0, %v293
    %v295 = vpop.f32.mrf.mxu0
    %v296 = vadd.f32 0.0, %v295
    %297 = vdwg.mxu0
    %v298 = vadd.f32 %v276, %v294
    %v299 = vadd.f32 %v277, %v296
    %v300 = vadd.f32 %v298, %v94
    %v301 = vadd.f32 %v299, %v94
    %v302 = vtanh.pop %v300
    %v303 = vtanh.pop %v301
    %v304 = vpack.c.bf16 %v302, %v302
    %v305 = vpack.c.bf16 %v303, %v303
    %s306 = scalar_lea.vmem [#allocation9], 32
    %307 = vst [vmem:[%s306] sm:$0xf] %v304
    %308 = vst [vmem:[%s306 + $0x4] sm:$0xf] %v305
    %s309 = scalar_lea.vmem [#allocation3], 80
    %v310 = vld [vmem:[%s309] sm:$0xff]
    %v311 = vld [vmem:[%s309 + $0x8] sm:$0xff]
    %v314 = vunpack.c.l.b16 %v304
    %v315 = vunpack.c.l.b16 %v305
    %v316 = vpack.c.b16 %v315, %v314
    %318 = vmatpush.bf16.msra.mxu0 %v140
    %319 = vmatpush.bf16.msra.mxu0 %v139
    %320 = vmatpush.bf16.msra.mxu0 %v138
    %321 = vmatpush.bf16.msra.mxu0 %v137
    %322 = vmatpush.bf16.msra.mxu0 %v136
    %323 = vmatpush.bf16.msra.mxu0 %v135
    %324 = vmatpush.bf16.msra.mxu0 %v134
    %325 = vmatpush.bf16.msra.mxu0 %v133
    %326 = vmatmul.bf16.gmra.mxu0 %v316
    %v327 = vpop.f32.mrf.mxu0
    %v328 = vadd.f32 0.0, %v327
    %v329 = vpop.f32.mrf.mxu0
    %v330 = vadd.f32 0.0, %v329
    %331 = vdwg.mxu0
    %v332 = vadd.f32 %v310, %v328
    %v333 = vadd.f32 %v311, %v330
    %v334 = vadd.f32 %v332, %v94
    %v335 = vadd.f32 %v333, %v94
    %v336 = vtanh.pop %v334
    %v337 = vtanh.pop %v335
    %v338 = vpack.c.bf16 %v336, %v336
    %v339 = vpack.c.bf16 %v337, %v337
    %s340 = scalar_lea.vmem [#allocation9], 40
    %341 = vst [vmem:[%s340] sm:$0xf] %v338
    %342 = vst [vmem:[%s340 + $0x4] sm:$0xf] %v339
    %s343 = scalar_lea.vmem [#allocation3], 96
    %v344 = vld [vmem:[%s343] sm:$0xff]
    %v345 = vld [vmem:[%s343 + $0x8] sm:$0xff]
    %v348 = vunpack.c.l.b16 %v338
    %v349 = vunpack.c.l.b16 %v339
    %v350 = vpack.c.b16 %v349, %v348
    %352 = vmatpush.bf16.msra.mxu0 %v140
    %353 = vmatpush.bf16.msra.mxu0 %v139
    %354 = vmatpush.bf16.msra.mxu0 %v138
    %355 = vmatpush.bf16.msra.mxu0 %v137
    %356 = vmatpush.bf16.msra.mxu0 %v136
    %357 = vmatpush.bf16.msra.mxu0 %v135
    %358 = vmatpush.bf16.msra.mxu0 %v134
    %359 = vmatpush.bf16.msra.mxu0 %v133
    %360 = vmatmul.bf16.gmra.mxu0 %v350
    %v361 = vpop.f32.mrf.mxu0
    %v362 = vadd.f32 0.0, %v361
    %v363 = vpop.f32.mrf.mxu0
    %v364 = vadd.f32 0.0, %v363
    %365 = vdwg.mxu0
    %v366 = vadd.f32 %v344, %v362
    %v367 = vadd.f32 %v345, %v364
    %v368 = vadd.f32 %v366, %v94
    %v369 = vadd.f32 %v367, %v94
    %v370 = vtanh.pop %v368
    %v371 = vtanh.pop %v369
    %v372 = vpack.c.bf16 %v370, %v370
    %v373 = vpack.c.bf16 %v371, %v371
    %s374 = scalar_lea.vmem [#allocation9], 48
    %375 = vst [vmem:[%s374] sm:$0xf] %v372
    %376 = vst [vmem:[%s374 + $0x4] sm:$0xf] %v373
    %s377 = scalar_lea.vmem [#allocation3], 112
    %v378 = vld [vmem:[%s377] sm:$0xff]
    %v379 = vld [vmem:[%s377 + $0x8] sm:$0xff]
    %v382 = vunpack.c.l.b16 %v372
    %v383 = vunpack.c.l.b16 %v373
    %v384 = vpack.c.b16 %v383, %v382
    %386 = vmatpush.bf16.msra.mxu0 %v140
    %387 = vmatpush.bf16.msra.mxu0 %v139
    %388 = vmatpush.bf16.msra.mxu0 %v138
    %389 = vmatpush.bf16.msra.mxu0 %v137
    %390 = vmatpush.bf16.msra.mxu0 %v136
    %391 = vmatpush.bf16.msra.mxu0 %v135
    %392 = vmatpush.bf16.msra.mxu0 %v134
    %393 = vmatpush.bf16.msra.mxu0 %v133
    %394 = vmatmul.bf16.gmra.mxu0 %v384
    %v395 = vpop.f32.mrf.mxu0
    %v396 = vadd.f32 0.0, %v395
    %v397 = vpop.f32.mrf.mxu0
    %v398 = vadd.f32 0.0, %v397
    %399 = vdwg.mxu0
    %v400 = vadd.f32 %v378, %v396
    %v401 = vadd.f32 %v379, %v398
    %v402 = vadd.f32 %v400, %v94
    %v403 = vadd.f32 %v401, %v94
    %v404 = vtanh.pop %v402
    %v405 = vtanh.pop %v403
    %v406 = vpack.c.bf16 %v404, %v404
    %v407 = vpack.c.bf16 %v405, %v405
    %s408 = scalar_lea.vmem [#allocation9], 56
    %409 = vst [vmem:[%s408] sm:$0xf] %v406
    %410 = vst [vmem:[%s408 + $0x4] sm:$0xf] %v407
    %411 = vst [vmem:[#allocation2] sm:$0xff] %v404
    %412 = vst [vmem:[#allocation2 + $0x8] sm:$0xff] %v405
    // Predicated region
    $region34: #{tpu_custom_call.1} parent=1 // pred_check
      %p413 = pneg %p68
    $region35: #{tpu_custom_call.1} parent=1 // pred_check_branch
      %415 = sbr.rel (%p413) target = $region37
    $region36: #{tpu_custom_call.1} parent=1 // pred_region
      %416 = vst [vmem:[#allocation10] sm:$0xff] %v404
      %417 = vst [vmem:[#allocation10 + $0x8] sm:$0xff] %v405
    $region37: #{tpu_custom_call.1} parent=1 // pred_fallthru
      _
    // Predicated region
    $region38: #{tpu_custom_call.1} parent=1 // pred_check
      _
    $region39: #{tpu_custom_call.1} parent=1 // pred_check_branch
      %419 = sbr.rel (0) target = $region41
    $region40: #{tpu_custom_call.1} parent=1 // pred_region
      %421 = vsyncadd [#allocation5], 0
      %s422 = sshll.u32 [#allocation9], 4
      %s423 = int_to_ptr.vmem [resolvable:$true] %s422
      %s424 = sshll.u32 %s4, 4
      %s425 = int_to_ptr.hbm [resolvable:$true] %s424
      %430 = dma.vmem_to_hbm [thread:$0]  %s423, 1024, %s425, [#allocation5], 64, 64, 4
    $region41: #{tpu_custom_call.1} parent=1 // pred_fallthru
      _
    // Predicated region
    $region42: #{tpu_custom_call.1} parent=1 // pred_check
      _
    $region43: #{tpu_custom_call.1} parent=1 // pred_check_branch
      %432 = sbr.rel (0) target = $region45
    $region44: #{tpu_custom_call.1} parent=1 // pred_region
      %434 = vsyncadd [#allocation11], 0
      %s435 = sshll.u32 [#allocation10], 4
      %s436 = int_to_ptr.vmem [resolvable:$true] %s435
      %s437 = sshll.u32 %s5, 4
      %s438 = int_to_ptr.hbm [resolvable:$true] %s437
      %443 = dma.vmem_to_hbm [thread:$0]  %s436, 256, %s438, [#allocation11], 128, 128, 8
    $region45: #{tpu_custom_call.1} parent=1 // pred_fallthru
      _
    // Predicated region
    $region46: #{tpu_custom_call.1} parent=1 // pred_check
      _
    $region47: #{tpu_custom_call.1} parent=1 // pred_check_branch
      %445 = sbr.rel (0) target = $region49
    $region48: #{tpu_custom_call.1} parent=1 // pred_region
      %447 = dma.done [#allocation5], 1024
    $region49: #{tpu_custom_call.1} parent=1 // pred_fallthru
      _
    // Predicated region
    $region50: #{tpu_custom_call.1} parent=1 // pred_check
      _
    $region51: #{tpu_custom_call.1} parent=1 // pred_check_branch
      %449 = sbr.rel (0) target = $region53
    $region52: #{tpu_custom_call.1} parent=1 // pred_region
      %451 = dma.done [#allocation11], 256
    $region53: #{tpu_custom_call.1} parent=1 // pred_fallthru
      _
    %452 = vsyncpa [#allocation4], 1
    %453 = vsyncpa [#allocation7], 1
    %454 = vsyncpa [#allocation5], 1
    %455 = vsyncpa [#allocation11], 1

</llo_original>
